<compile_context>
chip_gen: v6e
topology: v6e:2x2x1
jax: 0.10.0
libtpu: 0.0.40
codegen_flags: <defaults>
</compile_context>

<pallas_src>
import functools

import jax
import jax.numpy as jnp
from jax.experimental import pallas as pl
from jax.experimental.pallas import tpu as pltpu


_MAX_TILE_B = 1024  # rows per grid step; safe w/ double-buffering on v7x VMEM


def _round_up(x, m):
    return ((x + m - 1) // m) * m


def _vector_field_kernel(z_ref, w_ref, f_ref, xnext_ref, *, dt, state_dim):
    """Fused affine vector field + Euler step.

    f      = z @ W            (z = [x, u, p, 1], W = [Wx; Wu; Wp; b])
    x_next = x + dt * f       (x = z[:, :state_dim])
    """
    z = z_ref[...]
    f = jnp.dot(z, w_ref[...], preferred_element_type=jnp.float32)
    f_ref[...] = f
    xnext_ref[...] = z[:, :state_dim] + dt * f


@functools.partial(jax.jit, static_argnames=("dt",))
def _vector_field_forward(states, controls, parameters, w_aug, *, dt):
    B, state_dim = states.shape
    K = w_aug.shape[0]  # state_dim + control_dim + param_dim + 1

    # Fuse inputs: one (B, K) operand, bias handled via the trailing ones col.
    z = jnp.concatenate(
        [states, controls, parameters, jnp.ones((B, 1), jnp.float32)], axis=1)

    tile_b = min(_MAX_TILE_B, _round_up(B, 8))
    b_pad = _round_up(B, tile_b)
    if b_pad != B:
        z = jnp.pad(z, ((0, b_pad - B), (0, 0)))

    kernel = functools.partial(_vector_field_kernel, dt=dt, state_dim=state_dim)

    f, x_next = pl.pallas_call(
        kernel,
        out_shape=(
            jax.ShapeDtypeStruct((b_pad, state_dim), jnp.float32),
            jax.ShapeDtypeStruct((b_pad, state_dim), jnp.float32),
        ),
        grid=(b_pad // tile_b,),
        in_specs=[
            # Batch-tiled fused input, double-buffered by the pipeline.
            pl.BlockSpec((tile_b, K), lambda i: (i, 0)),
            # Fused weight: full array, VMEM-resident across all grid steps.
            pl.BlockSpec((K, state_dim), lambda i: (0, 0)),
        ],
        out_specs=(
            pl.BlockSpec((tile_b, state_dim), lambda i: (i, 0)),
            pl.BlockSpec((tile_b, state_dim), lambda i: (i, 0)),
        ),
        compiler_params=pltpu.CompilerParams(
            dimension_semantics=("parallel",)),
        cost_estimate=pl.CostEstimate(
            flops=2 * b_pad * K * state_dim,
            transcendentals=0,
            bytes_accessed=4 * (b_pad * K + K * state_dim
                                + 2 * b_pad * state_dim)),
    )(z, w_aug)

    if b_pad != B:
        f = f[:B]
        x_next = x_next[:B]
    return f, x_next


class VectorField:
    """JAX/Pallas port of rlkit VectorField (concrete affine realization)."""

    def __init__(self, state_dim, control_dim, parameter_dim, dt=0.05):
        self.state_dim = state_dim
        self.control_dim = control_dim
        self.param_dim = parameter_dim
        self.dt = float(dt)

        # Deterministic parameter init (synthetic; not a checkpoint load).
        kx, ku, kp, kb = jax.random.split(jax.random.PRNGKey(0), 4)
        self.Wx = (jax.random.normal(kx, (state_dim, state_dim), jnp.float32)
                   / jnp.sqrt(state_dim))
        self.Wu = (jax.random.normal(ku, (control_dim, state_dim), jnp.float32)
                   / jnp.sqrt(control_dim))
        self.Wp = (jax.random.normal(kp, (parameter_dim, state_dim), jnp.float32)
                   / jnp.sqrt(parameter_dim))
        self.b = 0.01 * jax.random.normal(kb, (1, state_dim), jnp.float32)

        # Fused weight for the single-matmul kernel: [Wx; Wu; Wp; b].
        self.W_aug = jnp.concatenate([self.Wx, self.Wu, self.Wp, self.b],
                                     axis=0)

    def forward(self, states, controls, parameters):
        """Returns (f, x_next) with f = f(x,u|p), x_next = x + dt*f."""
        B = states.shape[0]
        assert states.shape == (B, self.state_dim)
        assert controls.shape == (B, self.control_dim)
        assert parameters.shape == (B, self.param_dim)
        return _vector_field_forward(states, controls, parameters, self.W_aug,
                                     dt=self.dt)

    __call__ = forward


if __name__ == "__main__":
    # Small shapes consistent with the module's signature.
    B, STATE, CONTROL, PARAM = 8, 32, 16, 16
    key = jax.random.PRNGKey(0)
    kx, ku, kp = jax.random.split(key, 3)
    states = jax.random.normal(kx, (B, STATE), jnp.float32)
    controls = jax.random.normal(ku, (B, CONTROL), jnp.float32)
    parameters = jax.random.normal(kp, (B, PARAM), jnp.float32)

    vf = VectorField(STATE, CONTROL, PARAM, dt=0.05)
    f, x_next = vf(states, controls, parameters)
    jax.block_until_ready((f, x_next))

    # Pure-JAX reference check of the affine vector field + Euler step.
    f_ref = (jnp.dot(states, vf.Wx, precision="highest")
             + jnp.dot(controls, vf.Wu, precision="highest")
             + jnp.dot(parameters, vf.Wp, precision="highest")
             + vf.b)
    x_next_ref = states + vf.dt * f_ref
    assert jnp.allclose(f, f_ref, atol=1e-4, rtol=1e-4), "f mismatch"
    assert jnp.allclose(x_next, x_next_ref, atol=1e-4, rtol=1e-4), \
        "x_next mismatch"

    # TODO(synk): the original nn.Module's forward() is abstract
    # (NotImplementedError); the affine f above is a deterministic concrete
    # realization of the documented dynamics semantics. An Euler ROLLOUT loop
    # (state carried in VMEM across time steps) is the next fusion level if
    # this feeds a multi-step integrator.
    print("KERNEL_OK")
</pallas_src>

<mosaic_0001>
module attributes {stable_mosaic.version = 11 : i64} {
  func.func @_vector_field_kernel(%arg0: i32, %arg1: memref<8x65xf32, #tpu.memory_space<vmem>>, %arg2: memref<65x32xf32, #tpu.memory_space<vmem>>, %arg3: memref<8x32xf32, #tpu.memory_space<vmem>>, %arg4: memref<8x32xf32, #tpu.memory_space<vmem>>) attributes {dimension_semantics = [#tpu.dimension_semantics<parallel>], iteration_bounds = array<i64: 1>, scalar_prefetch = 0 : i64, scratch_operands = 0 : i64, tpu.core_type = #tpu.core_type<tc>, window_params = [{transform_indices = @transform_0, window_bounds = array<i64: 8, 65>}, {pipeline_mode = #tpu.pipeline_mode<synchronous>, transform_indices = @transform_1, window_bounds = array<i64: 65, 32>}, {transform_indices = @transform_2, window_bounds = array<i64: 8, 32>}, {transform_indices = @transform_3, window_bounds = array<i64: 8, 32>}]} {
    %c0 = arith.constant 0 : index
    %c0_0 = arith.constant 0 : index
    %0 = vector.load %arg1[%c0, %c0_0] : memref<8x65xf32, #tpu.memory_space<vmem>>, vector<8x65xf32>
    %c0_1 = arith.constant 0 : index
    %c0_2 = arith.constant 0 : index
    %1 = vector.load %arg2[%c0_1, %c0_2] : memref<65x32xf32, #tpu.memory_space<vmem>>, vector<65x32xf32>
    %cst = arith.constant dense<0.000000e+00> : vector<8x32xf32>
    %2 = tpu.matmul %0, %1, %cst {dimension_numbers = #tpu.dot_dimension_numbers<[1], [0], [0], [1], [0, 0, 1, 1], [], []>} : vector<8x65xf32>, vector<65x32xf32>, vector<8x32xf32> -> vector<8x32xf32>
    %c0_3 = arith.constant 0 : index
    %c0_4 = arith.constant 0 : index
    %3 = vector.load %arg3[%c0_3, %c0_4] : memref<8x32xf32, #tpu.memory_space<vmem>>, vector<8x32xf32>
    tpu.vector_store %arg3[%c0_3, %c0_4], %2 {strides = array<i32>} : memref<8x32xf32, #tpu.memory_space<vmem>>, vector<8x32xf32>,
    %4 = vector.extract_strided_slice %0 {offsets = [0, 0], sizes = [8, 32], strides = [1, 1]} : vector<8x65xf32> to vector<8x32xf32>
    %cst_5 = arith.constant 5.000000e-02 : f32
    %5 = vector.broadcast %cst_5 : f32 to vector<8x32xf32>
    %6 = arith.mulf %5, %2 : vector<8x32xf32>
    %7 = arith.addf %4, %6 : vector<8x32xf32>
    %c0_6 = arith.constant 0 : index
    %c0_7 = arith.constant 0 : index
    %8 = vector.load %arg4[%c0_6, %c0_7] : memref<8x32xf32, #tpu.memory_space<vmem>>, vector<8x32xf32>
    tpu.vector_store %arg4[%c0_6, %c0_7], %7 {strides = array<i32>} : memref<8x32xf32, #tpu.memory_space<vmem>>, vector<8x32xf32>,
    return
  }
  func.func @transform_0(%arg0: i32) -> (i32, i32) {
    %c0_i32 = arith.constant 0 : i32
    %c0_i32_0 = arith.constant 0 : i32
    return %arg0, %c0_i32 : i32, i32
  }
  func.func @transform_1(%arg0: i32) -> (i32, i32) {
    %c0_i32 = arith.constant 0 : i32
    %c0_i32_0 = arith.constant 0 : i32
    %c0_i32_1 = arith.constant 0 : i32
    return %c0_i32, %c0_i32_0 : i32, i32
  }
  func.func @transform_2(%arg0: i32) -> (i32, i32) {
    %c0_i32 = arith.constant 0 : i32
    %c0_i32_0 = arith.constant 0 : i32
    return %arg0, %c0_i32 : i32, i32
  }
  func.func @transform_3(%arg0: i32) -> (i32, i32) {
    %c0_i32 = arith.constant 0 : i32
    %c0_i32_0 = arith.constant 0 : i32
    return %arg0, %c0_i32 : i32, i32
  }
}

</mosaic_0001>

<llo_original>
// kernel: _vector_field_forward.1
$region0: #{_vector_field_forward.1}
  #allocation0 [shape = 'u32[]', space=smem, size = 0x4, offset = 0x4, fixed_abs, tag = 'smem constant byte address 0x4 - core index']
  #allocation1 [shape = 'u32[144,128]{1,0:T(1,128)}', space=vmem, size = 0x12000, scoped, tag = 'internal scratch']
  %s0 = inlined_call_operand.vmem [shape: f32[8,65], index: 0, kind: input, shape index: {}]
  %s1 = inlined_call_operand.vmem [shape: f32[65,32], index: 1, kind: input, shape index: {}]
  %s2 = inlined_call_operand.hbm [shape: f32[8,32], index: 2, kind: output, shape index: {0}]
  %s3 = inlined_call_operand.hbm [shape: f32[8,32], index: 3, kind: output, shape index: {1}]
  %4 = xla_tuple %s2, %s3
  %s5 = sld [smem:[#allocation0]]
  $region26: #{_vector_field_forward.1} parent=0
    _
  %s7 = ssub.s32 1, %s5
  %s8 = scalar_select 0, %s7, %s5
  $region1: #{_vector_field_forward.1} parent=0
    #allocation2 [shape = 'u8[4096]{0}', space=vmem, size = 0x1000, scoped, tag = 'output window, operand 0, single buffered']
    #allocation3 [shape = 's32[1]{0}', space=sflag, size = 0x4, scoped, tag = 'scoped memory for _vector_field_forward.1']
    #allocation4 [shape = 'u8[4096]{0}', space=vmem, size = 0x1000, scoped, tag = 'output window, operand 1, single buffered']
    #allocation5 [shape = 's32[1]{0}', space=sflag, size = 0x4, scoped, tag = 'scoped memory for _vector_field_forward.1']
    %9 = vsyncpa [#allocation3], 0
    %10 = vsyncpa [#allocation5], 0
    // Predicated region
    $region2: #{_vector_field_forward.1} parent=1 // pred_check
      _
    $region3: #{_vector_field_forward.1} parent=1 // pred_check_branch
      %12 = sbr.rel (0) target = $region5
    $region4: #{_vector_field_forward.1} parent=1 // pred_region
      _
    $region5: #{_vector_field_forward.1} parent=1 // pred_fallthru
      _
    // Predicated region
    $region6: #{_vector_field_forward.1} parent=1 // pred_check
      _
    $region7: #{_vector_field_forward.1} parent=1 // pred_check_branch
      %14 = sbr.rel (0) target = $region9
    $region8: #{_vector_field_forward.1} parent=1 // pred_region
      _
    $region9: #{_vector_field_forward.1} parent=1 // pred_fallthru
      _
    %v15 = vld [vmem:[%s0] sm:$0xff]
    %v16 = vld [vmem:[%s1] sm:$0xff]
    %v17 = vld [vmem:[%s1 + $0x8] sm:$0xff]
    %v18 = vld [vmem:[%s1 + $0x10] sm:$0xff]
    %v19 = vld [vmem:[%s1 + $0x18] sm:$0xff]
    %v20 = vld [vmem:[%s1 + $0x20] sm:$0xff]
    %v21 = vld [vmem:[%s1 + $0x28] sm:$0xff]
    %v22 = vld [vmem:[%s1 + $0x30] sm:$0xff]
    %v23 = vld [vmem:[%s1 + $0x38] sm:$0xff]
    %v24 = vld [vmem:[%s1 + $0x40] sm:$0x1]
    %vm25 = vcmask 531456
    %v27 = vsel %vm25, %v15, 0
    %vm29 = vcmask 1040384
    %v31 = vsel %vm29, %v24, 0
    %33 = vmatprep.subr.mxu0 0.0
    %34 = vmatpush1.msra.mxu0 0.0
    %35 = vmatprep.subr.mxu0 0.0
    %36 = vmatpush1.msra.mxu0 0.0
    %37 = vmatprep.subr.mxu0 0.0
    %38 = vmatpush1.msra.mxu0 0.0
    %39 = vmatprep.subr.mxu0 0.0
    %40 = vmatpush1.msra.mxu0 0.0
    %41 = vmatprep.subr.mxu0 0.0
    %42 = vmatpush1.msra.mxu0 0.0
    %43 = vmatprep.subr.mxu0 0.0
    %44 = vmatpush1.msra.mxu0 0.0
    %45 = vmatprep.subr.mxu0 0.0
    %46 = vmatpush1.msra.mxu0 0.0
    %47 = vmatprep.subr.mxu0 0.0
    %48 = vmatpush1.msra.mxu0 %v31
    %49 = vmatprep.subr.mxu0 0.0
    %50 = vmatpush1.msra.mxu0 %v23
    %51 = vmatprep.subr.mxu0 0.0
    %52 = vmatpush1.msra.mxu0 %v22
    %53 = vmatprep.subr.mxu0 0.0
    %54 = vmatpush1.msra.mxu0 %v21
    %55 = vmatprep.subr.mxu0 0.0
    %56 = vmatpush1.msra.mxu0 %v20
    %57 = vmatprep.subr.mxu0 0.0
    %58 = vmatpush1.msra.mxu0 %v19
    %59 = vmatprep.subr.mxu0 0.0
    %60 = vmatpush1.msra.mxu0 %v18
    %61 = vmatprep.subr.mxu0 0.0
    %62 = vmatpush1.msra.mxu0 %v17
    %63 = vmatprep.subr.mxu0 0.0
    %64 = vmatpush1.msra.mxu0 %v16
    %65 = vmatprep.subr.mxu0 0.0
    %66 = vmatpush2.msra.mxu0 0.0
    %67 = vmatprep.subr.mxu0 0.0
    %68 = vmatpush2.msra.mxu0 0.0
    %69 = vmatprep.subr.mxu0 0.0
    %70 = vmatpush2.msra.mxu0 0.0
    %71 = vmatprep.subr.mxu0 0.0
    %72 = vmatpush2.msra.mxu0 0.0
    %73 = vmatprep.subr.mxu0 0.0
    %74 = vmatpush2.msra.mxu0 0.0
    %75 = vmatprep.subr.mxu0 0.0
    %76 = vmatpush2.msra.mxu0 0.0
    %77 = vmatprep.subr.mxu0 0.0
    %78 = vmatpush2.msra.mxu0 0.0
    %79 = vmatprep.subr.mxu0 0.0
    %80 = vmatpush2.msra.mxu0 0.0
    %81 = vmatprep.subr.mxu0 0.0
    %82 = vmatpush2.msra.mxu0 0.0
    %83 = vmatprep.subr.mxu0 0.0
    %84 = vmatpush2.msra.mxu0 0.0
    %85 = vmatprep.subr.mxu0 0.0
    %86 = vmatpush2.msra.mxu0 0.0
    %87 = vmatprep.subr.mxu0 0.0
    %88 = vmatpush2.msra.mxu0 0.0
    %89 = vmatprep.subr.mxu0 0.0
    %90 = vmatpush2.msra.mxu0 0.0
    %91 = vmatprep.subr.mxu0 0.0
    %92 = vmatpush2.msra.mxu0 0.0
    %93 = vmatprep.subr.mxu0 0.0
    %94 = vmatpush2.msra.mxu0 0.0
    %95 = vmatprep.subr.mxu0 0.0
    %96 = vmatpush2.msra.mxu0 0.0
    %97 = vmatprep.mubr.f32.mxu0 0.0
    %98 = vmatmul.mubr.f32.gmra.mxu0 %v27
    %v99 = vpop.f32.mrf.mxu0
    %v100 = vadd.f32 0.0, %v99
    %v101 = vpop.f32.mrf.mxu0
    %102 = vdwg.mxu0
    %vm103 = vcmask 261120
    %104 = vst.msk [vmem:[#allocation2] sm:$0xff] %vm103, %v100
    %v105 = vmul.f32 %v100, 0.05
    %v106 = vadd.f32 %v15, %v105
    %107 = vst.msk [vmem:[#allocation4] sm:$0xff] %vm103, %v106
    // Predicated region
    $region10: #{_vector_field_forward.1} parent=1 // pred_check
      _
    $region11: #{_vector_field_forward.1} parent=1 // pred_check_branch
      %109 = sbr.rel (0) target = $region13
    $region12: #{_vector_field_forward.1} parent=1 // pred_region
      %s111 = ssub.s32 128, 128
      %112 = vsyncadd [#allocation3], %s111
      %s114 = sshll.u32 [#allocation2], 4
      %s115 = int_to_ptr.vmem [resolvable:$true] %s114
      %117 = dma.vmem_to_hbm [thread:$0]  %s115, 128, %s2, [#allocation3]
    $region13: #{_vector_field_forward.1} parent=1 // pred_fallthru
      _
    // Predicated region
    $region14: #{_vector_field_forward.1} parent=1 // pred_check
      _
    $region15: #{_vector_field_forward.1} parent=1 // pred_check_branch
      %119 = sbr.rel (0) target = $region17
    $region16: #{_vector_field_forward.1} parent=1 // pred_region
      %s121 = ssub.s32 128, 128
      %122 = vsyncadd [#allocation5], %s121
      %s124 = sshll.u32 [#allocation4], 4
      %s125 = int_to_ptr.vmem [resolvable:$true] %s124
      %127 = dma.vmem_to_hbm [thread:$0]  %s125, 128, %s3, [#allocation5]
    $region17: #{_vector_field_forward.1} parent=1 // pred_fallthru
      _
    // Predicated region
    $region18: #{_vector_field_forward.1} parent=1 // pred_check
      _
    $region19: #{_vector_field_forward.1} parent=1 // pred_check_branch
      %129 = sbr.rel (0) target = $region21
    $region20: #{_vector_field_forward.1} parent=1 // pred_region
      %130 = dma.done [#allocation3], 128
    $region21: #{_vector_field_forward.1} parent=1 // pred_fallthru
      _
    // Predicated region
    $region22: #{_vector_field_forward.1} parent=1 // pred_check
      _
    $region23: #{_vector_field_forward.1} parent=1 // pred_check_branch
      %132 = sbr.rel (0) target = $region25
    $region24: #{_vector_field_forward.1} parent=1 // pred_region
      %133 = dma.done [#allocation5], 128
    $region25: #{_vector_field_forward.1} parent=1 // pred_fallthru
      _
    %134 = vsyncpa [#allocation3], 1
    %135 = vsyncpa [#allocation5], 1

</llo_original>
